<compile_context>
chip_gen: v5e
topology: v5e:2x2
jax: 0.10.0
libtpu: 0.0.40
codegen_flags: <defaults>
</compile_context>

<pallas_src>
import functools
import math

import jax
import jax.numpy as jnp
from jax.experimental import pallas as pl
from jax.experimental.pallas import tpu as pltpu


def _cnn_stack_kernel(x_ref, w_ref, b_ref, o_ref, buf0, buf1, *,
                      n_layers, ksize, seq_len, pad_l):
    # x_ref : (1, S, Hp)        bf16  embedded tokens for one batch element
    # w_ref : (L*K, Hp, Hp)     bf16  all conv weights (resident across grid)
    # b_ref : (L, 1, Hp)        f32   all conv biases
    # o_ref : (1, S, Hp)        f32   last layer's output (channels-last)
    # buf0/buf1: (S+K-1, Hp)    f32   VMEM ping-pong activation buffers
    bufs = (buf0, buf1)

    # Zero once: the halo rows of both buffers are never written afterwards,
    # giving the 'same' zero padding for every layer with no HBM pad copy.
    buf0[...] = jnp.zeros_like(buf0)
    buf1[...] = jnp.zeros_like(buf1)
    buf0[pad_l:pad_l + seq_len, :] = x_ref[0].astype(buf0.dtype)

    for layer in range(n_layers):                 # static unroll over layers
        src = bufs[layer % 2]
        dst = bufs[(layer + 1) % 2]
        acc = jnp.zeros((seq_len, o_ref.shape[2]), jnp.float32)
        for k in range(ksize):                    # static unroll over taps
            acc += jnp.dot(
                src[k:k + seq_len, :].astype(jnp.bfloat16),   # bf16 MXU feed
                w_ref[layer * ksize + k],
                preferred_element_type=jnp.float32,
            )
        y = jnp.maximum(acc + b_ref[layer], 0.0)  # fused bias + ReLU in f32
        if layer == n_layers - 1:
            o_ref[0] = y.astype(o_ref.dtype)      # lane-dense final store
        else:
            dst[pad_l:pad_l + seq_len, :] = y.astype(dst.dtype)


def cnn_encoder_stack(emb_bsc, weights, biases, *, n_layers, kernel_size):
    """Fused n_layers x (same-padded Conv1d + ReLU), channels-last.

    emb_bsc: (B, S, Hp) bf16; weights: (L*K, Hp, Hp) bf16; biases: (L, 1, Hp) f32.
    Returns (B, S, Hp) f32.
    """
    B, S, Hp = emb_bsc.shape
    K = kernel_size
    L = n_layers
    pad_l = (K - 1) // 2

    kernel = functools.partial(_cnn_stack_kernel, n_layers=L, ksize=K,
                               seq_len=S, pad_l=pad_l)
    return pl.pallas_call(
        kernel,
        out_shape=jax.ShapeDtypeStruct((B, S, Hp), jnp.float32),
        grid_spec=pltpu.PrefetchScalarGridSpec(
            num_scalar_prefetch=0,
            grid=(B,),
            in_specs=[
                pl.BlockSpec((1, S, Hp), lambda b: (b, 0, 0)),       # activations
                pl.BlockSpec((L * K, Hp, Hp), lambda b: (0, 0, 0)),  # weights (cached)
                pl.BlockSpec((L, 1, Hp), lambda b: (0, 0, 0)),       # biases (cached)
            ],
            out_specs=pl.BlockSpec((1, S, Hp), lambda b: (b, 0, 0)),
            scratch_shapes=[
                pltpu.VMEM((S + K - 1, Hp), jnp.float32),  # ping
                pltpu.VMEM((S + K - 1, Hp), jnp.float32),  # pong
            ],
        ),
        compiler_params=pltpu.CompilerParams(
            dimension_semantics=("parallel",),
            vmem_limit_bytes=48 * 1024 * 1024,  # explicit budget (v7x-safe)
        ),
    )(emb_bsc, weights, biases)


def _round_up(x, m):
    return ((x + m - 1) // m) * m


class CNNEncoderPallas:
    """JAX/Pallas port of CNNEncoder (embedding + fused Conv1d/ReLU stack)."""

    def __init__(self, input_size, hidden_size, n_layers=1, kernel_size=5,
                 dropout=0.3, *, key):
        assert kernel_size % 2 == 1, "same-padding math assumes odd kernel_size"
        self.input_size = input_size
        self.hidden_size = hidden_size
        self.n_layers = n_layers
        self.kernel_size = kernel_size
        self.dropout = dropout                       # inference-mode identity
        self.hidden_pad = _round_up(hidden_size, 128)  # lane-dense channel dim
        Hp = self.hidden_pad

        keys = jax.random.split(key, 1 + 2 * n_layers)

        # nn.Embedding default init: N(0, 1); zero-pad channels up to Hp, bf16.
        emb = jax.random.normal(keys[0], (input_size, hidden_size), jnp.float32)
        self.embedding = jnp.pad(
            emb, ((0, 0), (0, Hp - hidden_size))).astype(jnp.bfloat16)

        # nn.Conv1d default init: U(-b, b), b = 1/sqrt(in_channels*kernel_size).
        bound = 1.0 / math.sqrt(hidden_size * kernel_size)
        ws, bs = [], []
        for i in range(n_layers):
            w = jax.random.uniform(
                keys[1 + 2 * i], (kernel_size, hidden_size, hidden_size),
                minval=-bound, maxval=bound, dtype=jnp.float32)
            b = jax.random.uniform(
                keys[2 + 2 * i], (hidden_size,),
                minval=-bound, maxval=bound, dtype=jnp.float32)
            ws.append(jnp.pad(w, ((0, 0), (0, Hp - hidden_size),
                                  (0, Hp - hidden_size))))
            bs.append(jnp.pad(b, (0, Hp - hidden_size)))
        # (L*K, Hp, Hp) bf16 so the kernel indexes taps with a single static int.
        self.weights = jnp.stack(ws).reshape(
            n_layers * kernel_size, Hp, Hp).astype(jnp.bfloat16)
        self.biases = jnp.stack(bs).reshape(n_layers, 1, Hp)   # (L, 1, Hp) f32

    def __call__(self, tokens, *, channels_last=False):
        # tokens: (B, S) int32
        # Embedding gather stays in XLA (bf16 table => half the HBM bytes).
        # TODO(synk): could be fused into the kernel via scalar-prefetched token
        # ids driving an in-kernel row gather (saves one activation round trip).
        emb = jnp.take(self.embedding, tokens, axis=0)          # (B, S, Hp) bf16
        out = cnn_encoder_stack(emb, self.weights, self.biases,
                                n_layers=self.n_layers,
                                kernel_size=self.kernel_size)   # (B, S, Hp) f32
        out = out[:, :, :self.hidden_size]                      # drop channel pad
        if channels_last:
            return out                                          # (B, S, H)
        return jnp.transpose(out, (0, 2, 1))                    # PyTorch (B, H, S)


if __name__ == "__main__":
    key = jax.random.PRNGKey(0)
    k_model, k_tok = jax.random.split(key)

    batch, seq, vocab, hidden = 2, 8, 16, 32
    enc = CNNEncoderPallas(input_size=vocab, hidden_size=hidden,
                           n_layers=2, kernel_size=5, key=k_model)

    tokens = jax.random.randint(k_tok, (batch, seq), 0, vocab, dtype=jnp.int32)
    out = enc(tokens)
    jax.block_until_ready(out)
    assert out.shape == (batch, hidden, seq), out.shape
    print("KERNEL_OK")
</pallas_src>

<mosaic_0001>
module attributes {stable_mosaic.version = 11 : i64} {
  func.func @_cnn_stack_kernel(%arg0: i32, %arg1: memref<1x8x128xbf16, #tpu.memory_space<vmem>>, %arg2: memref<10x128x128xbf16, #tpu.memory_space<vmem>>, %arg3: memref<2x1x128xf32, #tpu.memory_space<vmem>>, %arg4: memref<1x8x128xf32, #tpu.memory_space<vmem>>, %arg5: memref<12x128xf32, #tpu.memory_space<vmem>>, %arg6: memref<12x128xf32, #tpu.memory_space<vmem>>) attributes {dimension_semantics = [#tpu.dimension_semantics<parallel>], iteration_bounds = array<i64: 2>, scalar_prefetch = 0 : i64, scratch_operands = 2 : i64, tpu.core_type = #tpu.core_type<tc>, window_params = [{transform_indices = @transform_0, window_bounds = array<i64: 1, 8, 128>}, {pipeline_mode = #tpu.pipeline_mode<synchronous>, transform_indices = @transform_1, window_bounds = array<i64: 10, 128, 128>}, {pipeline_mode = #tpu.pipeline_mode<synchronous>, transform_indices = @transform_2, window_bounds = array<i64: 2, 1, 128>}, {transform_indices = @transform_3, window_bounds = array<i64: 1, 8, 128>}]} {
    %cst = arith.constant 0.000000e+00 : f32
    %0 = vector.broadcast %cst : f32 to vector<12x128xf32>
    %c0 = arith.constant 0 : index
    %c0_0 = arith.constant 0 : index
    %1 = vector.load %arg5[%c0, %c0_0] : memref<12x128xf32, #tpu.memory_space<vmem>>, vector<12x128xf32>
    tpu.vector_store %arg5[%c0, %c0_0], %0 {strides = array<i32>} : memref<12x128xf32, #tpu.memory_space<vmem>>, vector<12x128xf32>,
    %cst_1 = arith.constant 0.000000e+00 : f32
    %2 = vector.broadcast %cst_1 : f32 to vector<12x128xf32>
    %c0_2 = arith.constant 0 : index
    %c0_3 = arith.constant 0 : index
    %3 = vector.load %arg6[%c0_2, %c0_3] : memref<12x128xf32, #tpu.memory_space<vmem>>, vector<12x128xf32>
    tpu.vector_store %arg6[%c0_2, %c0_3], %2 {strides = array<i32>} : memref<12x128xf32, #tpu.memory_space<vmem>>, vector<12x128xf32>,
    %c0_4 = arith.constant 0 : index
    %c0_5 = arith.constant 0 : index
    %c0_6 = arith.constant 0 : index
    %4 = vector.load %arg1[%c0_4, %c0_5, %c0_6] : memref<1x8x128xbf16, #tpu.memory_space<vmem>>, vector<1x8x128xbf16>
    %5 = vector.shape_cast %4 : vector<1x8x128xbf16> to vector<8x128xbf16>
    %6 = arith.extf %5 : vector<8x128xbf16> to vector<8x128xf32>
    %c2 = arith.constant 2 : index
    %c0_7 = arith.constant 0 : index
    %7 = vector.load %arg5[%c2, %c0_7] : memref<12x128xf32, #tpu.memory_space<vmem>>, vector<8x128xf32>
    tpu.vector_store %arg5[%c2, %c0_7], %6 {strides = array<i32>} : memref<12x128xf32, #tpu.memory_space<vmem>>, vector<8x128xf32>,
    %cst_8 = arith.constant 0.000000e+00 : f32
    %8 = vector.broadcast %cst_8 : f32 to vector<8x128xf32>
    %c0_9 = arith.constant 0 : index
    %c0_10 = arith.constant 0 : index
    %9 = vector.load %arg5[%c0_9, %c0_10] : memref<12x128xf32, #tpu.memory_space<vmem>>, vector<8x128xf32>
    %10 = arith.truncf %9 : vector<8x128xf32> to vector<8x128xbf16>
    %c0_11 = arith.constant 0 : index
    %c0_12 = arith.constant 0 : index
    %c0_13 = arith.constant 0 : index
    %11 = vector.load %arg2[%c0_11, %c0_12, %c0_13] : memref<10x128x128xbf16, #tpu.memory_space<vmem>>, vector<1x128x128xbf16>
    %12 = vector.shape_cast %11 : vector<1x128x128xbf16> to vector<128x128xbf16>
    %cst_14 = arith.constant dense<0.000000e+00> : vector<8x128xf32>
    %13 = tpu.matmul %10, %12, %cst_14 {dimension_numbers = #tpu.dot_dimension_numbers<[1], [0], [0], [1], [0, 0, 1, 1], [], []>} : vector<8x128xbf16>, vector<128x128xbf16>, vector<8x128xf32> -> vector<8x128xf32>
    %14 = arith.addf %8, %13 : vector<8x128xf32>
    %c1 = arith.constant 1 : index
    %c0_15 = arith.constant 0 : index
    %15 = vector.load %arg5[%c1, %c0_15] : memref<12x128xf32, #tpu.memory_space<vmem>>, vector<8x128xf32>
    %16 = arith.truncf %15 : vector<8x128xf32> to vector<8x128xbf16>
    %c1_16 = arith.constant 1 : index
    %c0_17 = arith.constant 0 : index
    %c0_18 = arith.constant 0 : index
    %17 = vector.load %arg2[%c1_16, %c0_17, %c0_18] : memref<10x128x128xbf16, #tpu.memory_space<vmem>>, vector<1x128x128xbf16>
    %18 = vector.shape_cast %17 : vector<1x128x128xbf16> to vector<128x128xbf16>
    %cst_19 = arith.constant dense<0.000000e+00> : vector<8x128xf32>
    %19 = tpu.matmul %16, %18, %cst_19 {dimension_numbers = #tpu.dot_dimension_numbers<[1], [0], [0], [1], [0, 0, 1, 1], [], []>} : vector<8x128xbf16>, vector<128x128xbf16>, vector<8x128xf32> -> vector<8x128xf32>
    %20 = arith.addf %14, %19 : vector<8x128xf32>
    %c2_20 = arith.constant 2 : index
    %c0_21 = arith.constant 0 : index
    %21 = vector.load %arg5[%c2_20, %c0_21] : memref<12x128xf32, #tpu.memory_space<vmem>>, vector<8x128xf32>
    %22 = arith.truncf %21 : vector<8x128xf32> to vector<8x128xbf16>
    %c2_22 = arith.constant 2 : index
    %c0_23 = arith.constant 0 : index
    %c0_24 = arith.constant 0 : index
    %23 = vector.load %arg2[%c2_22, %c0_23, %c0_24] : memref<10x128x128xbf16, #tpu.memory_space<vmem>>, vector<1x128x128xbf16>
    %24 = vector.shape_cast %23 : vector<1x128x128xbf16> to vector<128x128xbf16>
    %cst_25 = arith.constant dense<0.000000e+00> : vector<8x128xf32>
    %25 = tpu.matmul %22, %24, %cst_25 {dimension_numbers = #tpu.dot_dimension_numbers<[1], [0], [0], [1], [0, 0, 1, 1], [], []>} : vector<8x128xbf16>, vector<128x128xbf16>, vector<8x128xf32> -> vector<8x128xf32>
    %26 = arith.addf %20, %25 : vector<8x128xf32>
    %c3 = arith.constant 3 : index
    %c0_26 = arith.constant 0 : index
    %27 = vector.load %arg5[%c3, %c0_26] : memref<12x128xf32, #tpu.memory_space<vmem>>, vector<8x128xf32>
    %28 = arith.truncf %27 : vector<8x128xf32> to vector<8x128xbf16>
    %c3_27 = arith.constant 3 : index
    %c0_28 = arith.constant 0 : index
    %c0_29 = arith.constant 0 : index
    %29 = vector.load %arg2[%c3_27, %c0_28, %c0_29] : memref<10x128x128xbf16, #tpu.memory_space<vmem>>, vector<1x128x128xbf16>
    %30 = vector.shape_cast %29 : vector<1x128x128xbf16> to vector<128x128xbf16>
    %cst_30 = arith.constant dense<0.000000e+00> : vector<8x128xf32>
    %31 = tpu.matmul %28, %30, %cst_30 {dimension_numbers = #tpu.dot_dimension_numbers<[1], [0], [0], [1], [0, 0, 1, 1], [], []>} : vector<8x128xbf16>, vector<128x128xbf16>, vector<8x128xf32> -> vector<8x128xf32>
    %32 = arith.addf %26, %31 : vector<8x128xf32>
    %c4 = arith.constant 4 : index
    %c0_31 = arith.constant 0 : index
    %33 = vector.load %arg5[%c4, %c0_31] : memref<12x128xf32, #tpu.memory_space<vmem>>, vector<8x128xf32>
    %34 = arith.truncf %33 : vector<8x128xf32> to vector<8x128xbf16>
    %c4_32 = arith.constant 4 : index
    %c0_33 = arith.constant 0 : index
    %c0_34 = arith.constant 0 : index
    %35 = vector.load %arg2[%c4_32, %c0_33, %c0_34] : memref<10x128x128xbf16, #tpu.memory_space<vmem>>, vector<1x128x128xbf16>
    %36 = vector.shape_cast %35 : vector<1x128x128xbf16> to vector<128x128xbf16>
    %cst_35 = arith.constant dense<0.000000e+00> : vector<8x128xf32>
    %37 = tpu.matmul %34, %36, %cst_35 {dimension_numbers = #tpu.dot_dimension_numbers<[1], [0], [0], [1], [0, 0, 1, 1], [], []>} : vector<8x128xbf16>, vector<128x128xbf16>, vector<8x128xf32> -> vector<8x128xf32>
    %38 = arith.addf %32, %37 : vector<8x128xf32>
    %c0_36 = arith.constant 0 : index
    %c0_37 = arith.constant 0 : index
    %c0_38 = arith.constant 0 : index
    %39 = vector.load %arg3[%c0_36, %c0_37, %c0_38] : memref<2x1x128xf32, #tpu.memory_space<vmem>>, vector<1x1x128xf32>
    %40 = vector.shape_cast %39 : vector<1x1x128xf32> to vector<1x128xf32>
    %41 = vector.broadcast %40 : vector<1x128xf32> to vector<8x128xf32>
    %42 = arith.addf %38, %41 : vector<8x128xf32>
    %cst_39 = arith.constant 0.000000e+00 : f32
    %43 = vector.broadcast %cst_39 : f32 to vector<8x128xf32>
    %44 = arith.maximumf %42, %43 : vector<8x128xf32>
    %c2_40 = arith.constant 2 : index
    %c0_41 = arith.constant 0 : index
    %45 = vector.load %arg6[%c2_40, %c0_41] : memref<12x128xf32, #tpu.memory_space<vmem>>, vector<8x128xf32>
    tpu.vector_store %arg6[%c2_40, %c0_41], %44 {strides = array<i32>} : memref<12x128xf32, #tpu.memory_space<vmem>>, vector<8x128xf32>,
    %cst_42 = arith.constant 0.000000e+00 : f32
    %46 = vector.broadcast %cst_42 : f32 to vector<8x128xf32>
    %c0_43 = arith.constant 0 : index
    %c0_44 = arith.constant 0 : index
    %47 = vector.load %arg6[%c0_43, %c0_44] : memref<12x128xf32, #tpu.memory_space<vmem>>, vector<8x128xf32>
    %48 = arith.truncf %47 : vector<8x128xf32> to vector<8x128xbf16>
    %c5 = arith.constant 5 : index
    %c0_45 = arith.constant 0 : index
    %c0_46 = arith.constant 0 : index
    %49 = vector.load %arg2[%c5, %c0_45, %c0_46] : memref<10x128x128xbf16, #tpu.memory_space<vmem>>, vector<1x128x128xbf16>
    %50 = vector.shape_cast %49 : vector<1x128x128xbf16> to vector<128x128xbf16>
    %cst_47 = arith.constant dense<0.000000e+00> : vector<8x128xf32>
    %51 = tpu.matmul %48, %50, %cst_47 {dimension_numbers = #tpu.dot_dimension_numbers<[1], [0], [0], [1], [0, 0, 1, 1], [], []>} : vector<8x128xbf16>, vector<128x128xbf16>, vector<8x128xf32> -> vector<8x128xf32>
    %52 = arith.addf %46, %51 : vector<8x128xf32>
    %c1_48 = arith.constant 1 : index
    %c0_49 = arith.constant 0 : index
    %53 = vector.load %arg6[%c1_48, %c0_49] : memref<12x128xf32, #tpu.memory_space<vmem>>, vector<8x128xf32>
    %54 = arith.truncf %53 : vector<8x128xf32> to vector<8x128xbf16>
    %c6 = arith.constant 6 : index
    %c0_50 = arith.constant 0 : index
    %c0_51 = arith.constant 0 : index
    %55 = vector.load %arg2[%c6, %c0_50, %c0_51] : memref<10x128x128xbf16, #tpu.memory_space<vmem>>, vector<1x128x128xbf16>
    %56 = vector.shape_cast %55 : vector<1x128x128xbf16> to vector<128x128xbf16>
    %cst_52 = arith.constant dense<0.000000e+00> : vector<8x128xf32>
    %57 = tpu.matmul %54, %56, %cst_52 {dimension_numbers = #tpu.dot_dimension_numbers<[1], [0], [0], [1], [0, 0, 1, 1], [], []>} : vector<8x128xbf16>, vector<128x128xbf16>, vector<8x128xf32> -> vector<8x128xf32>
    %58 = arith.addf %52, %57 : vector<8x128xf32>
    %c2_53 = arith.constant 2 : index
    %c0_54 = arith.constant 0 : index
    %59 = vector.load %arg6[%c2_53, %c0_54] : memref<12x128xf32, #tpu.memory_space<vmem>>, vector<8x128xf32>
    %60 = arith.truncf %59 : vector<8x128xf32> to vector<8x128xbf16>
    %c7 = arith.constant 7 : index
    %c0_55 = arith.constant 0 : index
    %c0_56 = arith.constant 0 : index
    %61 = vector.load %arg2[%c7, %c0_55, %c0_56] : memref<10x128x128xbf16, #tpu.memory_space<vmem>>, vector<1x128x128xbf16>
    %62 = vector.shape_cast %61 : vector<1x128x128xbf16> to vector<128x128xbf16>
    %cst_57 = arith.constant dense<0.000000e+00> : vector<8x128xf32>
    %63 = tpu.matmul %60, %62, %cst_57 {dimension_numbers = #tpu.dot_dimension_numbers<[1], [0], [0], [1], [0, 0, 1, 1], [], []>} : vector<8x128xbf16>, vector<128x128xbf16>, vector<8x128xf32> -> vector<8x128xf32>
    %64 = arith.addf %58, %63 : vector<8x128xf32>
    %c3_58 = arith.constant 3 : index
    %c0_59 = arith.constant 0 : index
    %65 = vector.load %arg6[%c3_58, %c0_59] : memref<12x128xf32, #tpu.memory_space<vmem>>, vector<8x128xf32>
    %66 = arith.truncf %65 : vector<8x128xf32> to vector<8x128xbf16>
    %c8 = arith.constant 8 : index
    %c0_60 = arith.constant 0 : index
    %c0_61 = arith.constant 0 : index
    %67 = vector.load %arg2[%c8, %c0_60, %c0_61] : memref<10x128x128xbf16, #tpu.memory_space<vmem>>, vector<1x128x128xbf16>
    %68 = vector.shape_cast %67 : vector<1x128x128xbf16> to vector<128x128xbf16>
    %cst_62 = arith.constant dense<0.000000e+00> : vector<8x128xf32>
    %69 = tpu.matmul %66, %68, %cst_62 {dimension_numbers = #tpu.dot_dimension_numbers<[1], [0], [0], [1], [0, 0, 1, 1], [], []>} : vector<8x128xbf16>, vector<128x128xbf16>, vector<8x128xf32> -> vector<8x128xf32>
    %70 = arith.addf %64, %69 : vector<8x128xf32>
    %c4_63 = arith.constant 4 : index
    %c0_64 = arith.constant 0 : index
    %71 = vector.load %arg6[%c4_63, %c0_64] : memref<12x128xf32, #tpu.memory_space<vmem>>, vector<8x128xf32>
    %72 = arith.truncf %71 : vector<8x128xf32> to vector<8x128xbf16>
    %c9 = arith.constant 9 : index
    %c0_65 = arith.constant 0 : index
    %c0_66 = arith.constant 0 : index
    %73 = vector.load %arg2[%c9, %c0_65, %c0_66] : memref<10x128x128xbf16, #tpu.memory_space<vmem>>, vector<1x128x128xbf16>
    %74 = vector.shape_cast %73 : vector<1x128x128xbf16> to vector<128x128xbf16>
    %cst_67 = arith.constant dense<0.000000e+00> : vector<8x128xf32>
    %75 = tpu.matmul %72, %74, %cst_67 {dimension_numbers = #tpu.dot_dimension_numbers<[1], [0], [0], [1], [0, 0, 1, 1], [], []>} : vector<8x128xbf16>, vector<128x128xbf16>, vector<8x128xf32> -> vector<8x128xf32>
    %76 = arith.addf %70, %75 : vector<8x128xf32>
    %c1_68 = arith.constant 1 : index
    %c0_69 = arith.constant 0 : index
    %c0_70 = arith.constant 0 : index
    %77 = vector.load %arg3[%c1_68, %c0_69, %c0_70] : memref<2x1x128xf32, #tpu.memory_space<vmem>>, vector<1x1x128xf32>
    %78 = vector.shape_cast %77 : vector<1x1x128xf32> to vector<1x128xf32>
    %79 = vector.broadcast %78 : vector<1x128xf32> to vector<8x128xf32>
    %80 = arith.addf %76, %79 : vector<8x128xf32>
    %cst_71 = arith.constant 0.000000e+00 : f32
    %81 = vector.broadcast %cst_71 : f32 to vector<8x128xf32>
    %82 = arith.maximumf %80, %81 : vector<8x128xf32>
    %c0_72 = arith.constant 0 : index
    %c0_73 = arith.constant 0 : index
    %c0_74 = arith.constant 0 : index
    %83 = vector.load %arg4[%c0_72, %c0_73, %c0_74] : memref<1x8x128xf32, #tpu.memory_space<vmem>>, vector<1x8x128xf32>
    %84 = vector.shape_cast %83 : vector<1x8x128xf32> to vector<8x128xf32>
    %85 = vector.shape_cast %82 : vector<8x128xf32> to vector<1x8x128xf32>
    tpu.vector_store %arg4[%c0_72, %c0_73, %c0_74], %85 {strides = array<i32>} : memref<1x8x128xf32, #tpu.memory_space<vmem>>, vector<1x8x128xf32>,
    return
  }
  func.func @transform_0(%arg0: i32) -> (i32, i32, i32) {
    %c0_i32 = arith.constant 0 : i32
    %c0_i32_0 = arith.constant 0 : i32
    %c0_i32_1 = arith.constant 0 : i32
    return %arg0, %c0_i32, %c0_i32_0 : i32, i32, i32
  }
  func.func @transform_1(%arg0: i32) -> (i32, i32, i32) {
    %c0_i32 = arith.constant 0 : i32
    %c0_i32_0 = arith.constant 0 : i32
    %c0_i32_1 = arith.constant 0 : i32
    %c0_i32_2 = arith.constant 0 : i32
    return %c0_i32, %c0_i32_0, %c0_i32_1 : i32, i32, i32
  }
  func.func @transform_2(%arg0: i32) -> (i32, i32, i32) {
    %c0_i32 = arith.constant 0 : i32
    %c0_i32_0 = arith.constant 0 : i32
    %c0_i32_1 = arith.constant 0 : i32
    %c0_i32_2 = arith.constant 0 : i32
    return %c0_i32, %c0_i32_0, %c0_i32_1 : i32, i32, i32
  }
  func.func @transform_3(%arg0: i32) -> (i32, i32, i32) {
    %c0_i32 = arith.constant 0 : i32
    %c0_i32_0 = arith.constant 0 : i32
    %c0_i32_1 = arith.constant 0 : i32
    return %arg0, %c0_i32, %c0_i32_0 : i32, i32, i32
  }
}

</mosaic_0001>

<llo_original>
// kernel: tpu_custom_call.1
$region0: #{tpu_custom_call.1}
  #allocation0 [shape = 'u32[]', space=smem, size = 0x4, offset = 0x4, fixed_abs, tag = 'smem constant byte address 0x4 - core index']
  #allocation1 [shape = 'u32[72,128]{1,0:T(1,128)}', space=vmem, size = 0x9000, scoped, tag = 'internal scratch']
  #allocation2 [shape = 'f32[12,128]{1,0:T(8,128)}', space=vmem, size = 0x2000, scoped, tag = 'scratch operand']
  #allocation3 [shape = 'f32[12,128]{1,0:T(8,128)}', space=vmem, size = 0x2000, scoped, tag = 'scratch operand']
  %s0 = inlined_call_operand.hbm [shape: bf16[2,8,128], index: 0, kind: input, shape index: {}]
  %s1 = inlined_call_operand.hbm [shape: bf16[10,128,128], index: 1, kind: input, shape index: {}]
  %s2 = inlined_call_operand.hbm [shape: f32[2,1,128], index: 2, kind: input, shape index: {}]
  %s3 = inlined_call_operand.hbm [shape: f32[2,8,128], index: 3, kind: output, shape index: {}]
  %s4 = sld [smem:[#allocation0]]
  $region57: #{tpu_custom_call.1} parent=0
    _
  %s6 = ssub.s32 1, %s4
  %s7 = scalar_select 0, %s6, %s4
  $region1: #{tpu_custom_call.1} parent=0
    #allocation4 [shape = 'u8[4096]{0}', space=vmem, size = 0x1000, scoped, tag = 'input window, operand 0']
    #allocation5 [shape = 's32[2]{0}', space=sflag, size = 0x8, scoped, tag = 'scoped memory for tpu_custom_call.1']
    #allocation6 [shape = 's32[2]{0}', space=sflag, size = 0x8, scoped, tag = 'scoped memory for tpu_custom_call.1']
    #allocation7 [shape = 'u8[327680]{0}', space=vmem, size = 0x50000, scoped, tag = 'input window, operand 1, single buffered']
    #allocation8 [shape = 's32[1]{0}', space=sflag, size = 0x4, scoped, tag = 'scoped memory for tpu_custom_call.1']
    #allocation9 [shape = 'u8[1024]{0}', space=vmem, size = 0x400, scoped, tag = 'input window, operand 2, single buffered']
    #allocation10 [shape = 'u8[8192]{0}', space=vmem, size = 0x2000, scoped, tag = 'output window, operand 0']
    %8 = vsyncpa [#allocation5], 0
    %s9 = scalar_lea.sflag [#allocation5], 1
    %10 = vsyncpa %s9, 0
    %11 = vsyncpa [#allocation8], 0
    %12 = vsyncpa [#allocation6], 0
    %s13 = scalar_lea.sflag [#allocation6], 1
    %14 = vsyncpa %s13, 0
    loop: start=0, step=1, limit=4
    $region2: #{tpu_custom_call.1} parent=1 // loop_pre_header
      _
    $region3: #{tpu_custom_call.1} parent=1 // loop_header
      %s16 = sphi 0, %s20
      %p17 = scmp.ge.s32.totalorder %s16, 4
      %s26 = sphi 0, %s28
      %s29 = sphi 0, %s26
      %s30 = sphi 0, %s29
      %s46 = sphi 0, %s30
      %s50 = sphi 0, %s50
      %s52 = sphi 0, %s50
      %s53 = sphi 0, %s52
      %s67 = sphi 0, %s53
      %s71 = sphi 0, %s71
      %s73 = sphi 0, %s71
      %s74 = sphi 0, %s73
      %s88 = sphi 0, %s74
      %s94 = sphi 0, %s96
      %s97 = sphi 0, %s94
      %s98 = sphi 0, %s97
      %s114 = sphi 0, %s98
    $region4: #{tpu_custom_call.1} parent=1 // loop_header_branch
      %19 = sbr.rel (%p17) target = $region8
    $region5: #{tpu_custom_call.1} parent=1 // loop_body
      %s21 = ssub.s32 %s16, 1
      %s22 = ssub.s32 %s16, 2
      %s23 = sadd.s32 %s16, 1
      %s24 = ssub.s32 %s16, %s23
      %p25 = scmp.eq.s32.totalorder %s24, 0
      %s27 = sadd.s32 %s26, 1
      %s28 = scalar_select %p25, %s26, %s27
      %p31 = pneg %p25
      %p32 = scmp.eq.s32.totalorder %s16, 1
      %p33 = por %p31, %p32
      %p34 = scmp.ne.s32.totalorder %s26, %s29
      %p35 = scmp.eq.s32.totalorder %s16, 0
      %p36 = por %p34, %p35
      %p37 = scmp.ne.s32.totalorder %s26, %s29
      %p38 = scmp.eq.s32.totalorder %s21, 1
      %p39 = por %p37, %p38
      %p40 = scmp.ne.s32.totalorder %s29, %s30
      %p41 = scmp.eq.s32.totalorder %s21, 0
      %p42 = por %p40, %p41
      %p43 = scmp.ne.s32.totalorder %s29, %s30
      %p44 = scmp.eq.s32.totalorder %s22, 1
      %p45 = por %p43, %p44
      %p47 = scmp.ne.s32.totalorder %s30, %s46
      %p48 = scmp.eq.s32.totalorder %s22, 0
      %p49 = por %p47, %p48
      %s51 = sadd.s32 %s50, 1
      %p54 = scmp.eq.s32.totalorder %s16, 1
      %p55 = scmp.ne.s32.totalorder %s50, %s52
      %p56 = scmp.eq.s32.totalorder %s16, 0
      %p57 = por %p55, %p56
      %p58 = scmp.ne.s32.totalorder %s50, %s52
      %p59 = scmp.eq.s32.totalorder %s21, 1
      %p60 = por %p58, %p59
      %p61 = scmp.ne.s32.totalorder %s52, %s53
      %p62 = scmp.eq.s32.totalorder %s21, 0
      %p63 = por %p61, %p62
      %p64 = scmp.ne.s32.totalorder %s52, %s53
      %p65 = scmp.eq.s32.totalorder %s22, 1
      %p66 = por %p64, %p65
      %p68 = scmp.ne.s32.totalorder %s53, %s67
      %p69 = scmp.eq.s32.totalorder %s22, 0
      %p70 = por %p68, %p69
      %s72 = sadd.s32 %s71, 1
      %p75 = scmp.eq.s32.totalorder %s16, 1
      %p76 = scmp.ne.s32.totalorder %s71, %s73
      %p77 = scmp.eq.s32.totalorder %s16, 0
      %p78 = por %p76, %p77
      %p79 = scmp.ne.s32.totalorder %s71, %s73
      %p80 = scmp.eq.s32.totalorder %s21, 1
      %p81 = por %p79, %p80
      %p82 = scmp.ne.s32.totalorder %s73, %s74
      %p83 = scmp.eq.s32.totalorder %s21, 0
      %p84 = por %p82, %p83
      %p85 = scmp.ne.s32.totalorder %s73, %s74
      %p86 = scmp.eq.s32.totalorder %s22, 1
      %p87 = por %p85, %p86
      %p89 = scmp.ne.s32.totalorder %s74, %s88
      %p90 = scmp.eq.s32.totalorder %s22, 0
      %p91 = por %p89, %p90
      %s92 = ssub.s32 %s16, %s23
      %p93 = scmp.eq.s32.totalorder %s92, 0
      %s95 = sadd.s32 %s94, 1
      %s96 = scalar_select %p93, %s94, %s95
      %p99 = pneg %p93
      %p100 = scmp.eq.s32.totalorder %s16, 1
      %p101 = por %p99, %p100
      %p102 = scmp.ne.s32.totalorder %s94, %s97
      %p103 = scmp.eq.s32.totalorder %s16, 0
      %p104 = por %p102, %p103
      %p105 = scmp.ne.s32.totalorder %s94, %s97
      %p106 = scmp.eq.s32.totalorder %s21, 1
      %p107 = por %p105, %p106
      %p108 = scmp.ne.s32.totalorder %s97, %s98
      %p109 = scmp.eq.s32.totalorder %s21, 0
      %p110 = por %p108, %p109
      %p111 = scmp.ne.s32.totalorder %s97, %s98
      %p112 = scmp.eq.s32.totalorder %s22, 1
      %p113 = por %p111, %p112
      %p115 = scmp.ne.s32.totalorder %s98, %s114
      %p116 = scmp.eq.s32.totalorder %s22, 0
      %p117 = por %p115, %p116
      %p118 = scmp.le.s32.totalorder 1, %s16
      %p119 = scmp.lt.s32.totalorder %s16, 3
      %p120 = pnand %p118, %p119
      %p121 = pneg %p120
      // Predicated region
      $region9: #{tpu_custom_call.1} parent=5 // pred_check
        _
      $region10: #{tpu_custom_call.1} parent=5 // pred_check_branch
        %123 = sbr.rel (%p120) target = $region12
      $region11: #{tpu_custom_call.1} parent=5 // pred_region
        %s124 = ssub.s32 %s16, 1
        // Predicated region
        $region13: #{tpu_custom_call.1} parent=11 // pred_check
          %p125 = pneg %p63
        $region14: #{tpu_custom_call.1} parent=11 // pred_check_branch
          %127 = sbr.rel (%p125) target = $region16
        $region15: #{tpu_custom_call.1} parent=11 // pred_region
          %129 = vsyncadd [#allocation8], 0
          %s130 = sshll.u32 %s1, 4
          %s131 = int_to_ptr.hbm [resolvable:$true] %s130
          %s132 = sshll.u32 [#allocation7], 4
          %s133 = int_to_ptr.vmem [resolvable:$true] %s132
          %138 = dma.hbm_to_vmem [thread:$0]  %s131, 10240, %s133, [#allocation8], 64, 64, 4
        $region16: #{tpu_custom_call.1} parent=11 // pred_fallthru
          _
        // Predicated region
        $region17: #{tpu_custom_call.1} parent=11 // pred_check
          %p139 = pneg %p84
        $region18: #{tpu_custom_call.1} parent=11 // pred_check_branch
          %141 = sbr.rel (%p139) target = $region20
        $region19: #{tpu_custom_call.1} parent=11 // pred_region
          %143 = vsyncadd [#allocation8], 0
          %s144 = sshll.u32 %s2, 4
          %s145 = int_to_ptr.hbm [resolvable:$true] %s144
          %s146 = sshll.u32 [#allocation9], 4
          %s147 = int_to_ptr.vmem [resolvable:$true] %s146
          %152 = dma.hbm_to_vmem [thread:$0]  %s145, 32, %s147, [#allocation8], 16, 16, 1
        $region20: #{tpu_custom_call.1} parent=11 // pred_fallthru
          _
      $region12: #{tpu_custom_call.1} parent=5 // pred_fallthru
        _
      %p153 = scmp.lt.s32.totalorder %s16, 2
      // Predicated region
      $region21: #{tpu_custom_call.1} parent=5 // pred_check
        %p154 = pneg %p153
      $region22: #{tpu_custom_call.1} parent=5 // pred_check_branch
        %156 = sbr.rel (%p154) target = $region24
      $region23: #{tpu_custom_call.1} parent=5 // pred_region
        // Predicated region
        $region25: #{tpu_custom_call.1} parent=23 // pred_check
          %p157 = pneg %p36
        $region26: #{tpu_custom_call.1} parent=23 // pred_check_branch
          %159 = sbr.rel (%p157) target = $region28
        $region27: #{tpu_custom_call.1} parent=23 // pred_region
          %s160 = sand.u32 %s26, 1
          %s161 = scalar_lea.sflag [#allocation5], %s160
          %s162 = sand.u32 %s26, 1
          %s163 = smul.addr %s162, 4
          %s164 = scalar_lea.vmem [#allocation4], %s163
          %166 = vsyncadd %s161, 0
          %s167 = smul.addr %s16, 4
          %s168 = scalar_lea.hbm %s0, %s167
          %s170 = sshll.u32 %s168, 4
          %s171 = int_to_ptr.hbm [resolvable:$true] %s170
          %s172 = sshll.u32 %s164, 4
          %s173 = int_to_ptr.vmem [resolvable:$true] %s172
          %175 = dma.hbm_to_vmem [thread:$0]  %s171, 64, %s173, %s161
        $region28: #{tpu_custom_call.1} parent=23 // pred_fallthru
          _
      $region24: #{tpu_custom_call.1} parent=5 // pred_fallthru
        _
      %p176 = scmp.le.s32.totalorder 1, %s16
      %p177 = scmp.lt.s32.totalorder %s16, 3
      %p178 = pnand %p176, %p177
      %p179 = pneg %p178
      // Predicated region
      $region29: #{tpu_custom_call.1} parent=5 // pred_check
        _
      $region30: #{tpu_custom_call.1} parent=5 // pred_check_branch
        %181 = sbr.rel (%p178) target = $region32
      $region31: #{tpu_custom_call.1} parent=5 // pred_region
        %s182 = ssub.s32 %s16, 1
        %s183 = sand.u32 %s29, 1
        %s184 = scalar_lea.sflag [#allocation5], %s183
        %s185 = sand.u32 %s29, 1
        %s186 = smul.addr %s185, 4
        %s187 = scalar_lea.vmem [#allocation4], %s186
        // Predicated region
        $region33: #{tpu_custom_call.1} parent=31 // pred_check
          %p188 = pneg %p42
        $region34: #{tpu_custom_call.1} parent=31 // pred_check_branch
          %190 = sbr.rel (%p188) target = $region36
        $region35: #{tpu_custom_call.1} parent=31 // pred_region
          %192 = dma.done %s184, 64
        $region36: #{tpu_custom_call.1} parent=31 // pred_fallthru
          _
        // Predicated region
        $region37: #{tpu_custom_call.1} parent=31 // pred_check
          %p193 = pneg %p63
        $region38: #{tpu_custom_call.1} parent=31 // pred_check_branch
          %195 = sbr.rel (%p193) target = $region40
        $region39: #{tpu_custom_call.1} parent=31 // pred_region
          %197 = dma.done [#allocation8], 10240
        $region40: #{tpu_custom_call.1} parent=31 // pred_fallthru
          _
        // Predicated region
        $region41: #{tpu_custom_call.1} parent=31 // pred_check
          %p198 = pneg %p84
        $region42: #{tpu_custom_call.1} parent=31 // pred_check_branch
          %200 = sbr.rel (%p198) target = $region44
        $region43: #{tpu_custom_call.1} parent=31 // pred_region
          %202 = dma.done [#allocation8], 32
        $region44: #{tpu_custom_call.1} parent=31 // pred_fallthru
          _
        %s203 = sand.u32 %s29, 1
        %s204 = scalar_lea.sflag [#allocation5], %s203
        %s205 = sand.u32 %s29, 1
        %s206 = smul.addr %s205, 4
        %s207 = scalar_lea.vmem [#allocation4], %s206
        %p208 = pneg %p42
        %p209 = pneg %p39
        %p210 = pneg %p63
        %p211 = pneg %p60
        %p212 = pneg %p84
        %p213 = pneg %p81
        %p214 = pneg %p110
        %p215 = pneg %p107
        %s216 = sand.u32 %s97, 1
        %s217 = scalar_lea.sflag [#allocation6], %s216
        %s218 = sand.u32 %s97, 1
        %s219 = smul.addr %s218, 8
        %s220 = scalar_lea.vmem [#allocation10], %s219
        %221 = vst [vmem:[#allocation2] sm:$0xff] 0.0
        %222 = vst [vmem:[#allocation2 + $0x8] sm:$0xf] 0.0
        %223 = vst [vmem:[#allocation3] sm:$0xff] 0.0
        %224 = vst [vmem:[#allocation3 + $0x8] sm:$0xf] 0.0
        %v225 = vld [vmem:[%s187] sm:$0xf]
        %v226 = vunpack.c.l.bf16 %v225
        %227 = vst [vmem:[#allocation2 + $0x2] sm:$0xff] %v226
        %v228 = vld [vmem:[#allocation2] sm:$0xff]
        %v229 = vpack.c.bf16 %v228, %v228
        %v230 = vld [vmem:[#allocation7] sm:$0xf]
        %v231 = vld [vmem:[#allocation7 + $0x4] sm:$0xf]
        %v232 = vld [vmem:[#allocation7 + $0x8] sm:$0xf]
        %v233 = vld [vmem:[#allocation7 + $0xc] sm:$0xf]
        %v234 = vld [vmem:[#allocation7 + $0x10] sm:$0xf]
        %v235 = vld [vmem:[#allocation7 + $0x14] sm:$0xf]
        %v236 = vld [vmem:[#allocation7 + $0x18] sm:$0xf]
        %v237 = vld [vmem:[#allocation7 + $0x1c] sm:$0xf]
        %v238 = vld [vmem:[#allocation7 + $0x20] sm:$0xf]
        %v239 = vld [vmem:[#allocation7 + $0x24] sm:$0xf]
        %v240 = vld [vmem:[#allocation7 + $0x28] sm:$0xf]
        %v241 = vld [vmem:[#allocation7 + $0x2c] sm:$0xf]
        %v242 = vld [vmem:[#allocation7 + $0x30] sm:$0xf]
        %v243 = vld [vmem:[#allocation7 + $0x34] sm:$0xf]
        %v244 = vld [vmem:[#allocation7 + $0x38] sm:$0xf]
        %v245 = vld [vmem:[#allocation7 + $0x3c] sm:$0xf]
        %v246 = vld [vmem:[#allocation2 + $0x1] sm:$0xff]
        %v247 = vpack.c.bf16 %v246, %v246
        %s248 = scalar_lea.vmem [#allocation7], 64
        %v249 = vld [vmem:[%s248] sm:$0xf]
        %v250 = vld [vmem:[%s248 + $0x4] sm:$0xf]
        %v251 = vld [vmem:[%s248 + $0x8] sm:$0xf]
        %v252 = vld [vmem:[%s248 + $0xc] sm:$0xf]
        %v253 = vld [vmem:[%s248 + $0x10] sm:$0xf]
        %v254 = vld [vmem:[%s248 + $0x14] sm:$0xf]
        %v255 = vld [vmem:[%s248 + $0x18] sm:$0xf]
        %v256 = vld [vmem:[%s248 + $0x1c] sm:$0xf]
        %v257 = vld [vmem:[%s248 + $0x20] sm:$0xf]
        %v258 = vld [vmem:[%s248 + $0x24] sm:$0xf]
        %v259 = vld [vmem:[%s248 + $0x28] sm:$0xf]
        %v260 = vld [vmem:[%s248 + $0x2c] sm:$0xf]
        %v261 = vld [vmem:[%s248 + $0x30] sm:$0xf]
        %v262 = vld [vmem:[%s248 + $0x34] sm:$0xf]
        %v263 = vld [vmem:[%s248 + $0x38] sm:$0xf]
        %v264 = vld [vmem:[%s248 + $0x3c] sm:$0xf]
        %v281 = vunpack.c.l.b16 %v249
        %v282 = vunpack.c.l.b16 %v250
        %v283 = vunpack.c.l.b16 %v251
        %v284 = vunpack.c.l.b16 %v252
        %v285 = vunpack.c.l.b16 %v253
        %v286 = vunpack.c.l.b16 %v254
        %v287 = vunpack.c.l.b16 %v255
        %v288 = vunpack.c.l.b16 %v256
        %v289 = vunpack.c.l.b16 %v257
        %v290 = vunpack.c.l.b16 %v258
        %v291 = vunpack.c.l.b16 %v259
        %v292 = vunpack.c.l.b16 %v260
        %v293 = vunpack.c.l.b16 %v261
        %v294 = vunpack.c.l.b16 %v262
        %v295 = vunpack.c.l.b16 %v263
        %v296 = vunpack.c.l.b16 %v264
        %v297 = vpack.c.b16 %v282, %v281
        %v298 = vpack.c.b16 %v284, %v283
        %v299 = vpack.c.b16 %v286, %v285
        %v300 = vpack.c.b16 %v288, %v287
        %v301 = vpack.c.b16 %v290, %v289
        %v302 = vpack.c.b16 %v292, %v291
        %v303 = vpack.c.b16 %v294, %v293
        %v304 = vpack.c.b16 %v296, %v295
        %313 = vmatpush.bf16.msra.mxu0 %v304
        %314 = vmatpush.bf16.msra.mxu0 %v303
        %315 = vmatpush.bf16.msra.mxu0 %v302
        %316 = vmatpush.bf16.msra.mxu0 %v301
        %317 = vmatpush.bf16.msra.mxu0 %v300
        %318 = vmatpush.bf16.msra.mxu0 %v299
        %319 = vmatpush.bf16.msra.mxu0 %v298
        %320 = vmatpush.bf16.msra.mxu0 %v297
        %321 = vmatmul.bf16.gmra.mxu0 %v247
        %v322 = vpop.f32.mrf.mxu0
        %v323 = vadd.f32 0.0, %v322
        %v324 = vpop.f32.mrf.mxu0
        %325 = vdwg.mxu0
        %v342 = vunpack.c.l.b16 %v230
        %v343 = vunpack.c.l.b16 %v231
        %v344 = vunpack.c.l.b16 %v232
        %v345 = vunpack.c.l.b16 %v233
        %v346 = vunpack.c.l.b16 %v234
        %v347 = vunpack.c.l.b16 %v235
        %v348 = vunpack.c.l.b16 %v236
        %v349 = vunpack.c.l.b16 %v237
        %v350 = vunpack.c.l.b16 %v238
        %v351 = vunpack.c.l.b16 %v239
        %v352 = vunpack.c.l.b16 %v240
        %v353 = vunpack.c.l.b16 %v241
        %v354 = vunpack.c.l.b16 %v242
        %v355 = vunpack.c.l.b16 %v243
        %v356 = vunpack.c.l.b16 %v244
        %v357 = vunpack.c.l.b16 %v245
        %v358 = vpack.c.b16 %v343, %v342
        %v359 = vpack.c.b16 %v345, %v344
        %v360 = vpack.c.b16 %v347, %v346
        %v361 = vpack.c.b16 %v349, %v348
        %v362 = vpack.c.b16 %v351, %v350
        %v363 = vpack.c.b16 %v353, %v352
        %v364 = vpack.c.b16 %v355, %v354
        %v365 = vpack.c.b16 %v357, %v356
        %374 = vmatpush.bf16.msra.mxu0 %v365
        %375 = vmatpush.bf16.msra.mxu0 %v364
        %376 = vmatpush.bf16.msra.mxu0 %v363
        %377 = vmatpush.bf16.msra.mxu0 %v362
        %378 = vmatpush.bf16.msra.mxu0 %v361
        %379 = vmatpush.bf16.msra.mxu0 %v360
        %380 = vmatpush.bf16.msra.mxu0 %v359
        %381 = vmatpush.bf16.msra.mxu0 %v358
        %382 = vmatmul.bf16.gmra.mxu0 %v229
        %v383 = vpop.f32.mrf.mxu0
        %v384 = vadd.f32 %v323, %v383
        %v385 = vpop.f32.mrf.mxu0
        %386 = vdwg.mxu0
        %v387 = vld [vmem:[#allocation2 + $0x2] sm:$0xff]
        %v388 = vpack.c.bf16 %v387, %v387
        %s389 = scalar_lea.vmem [#allocation7], 128
        %v390 = vld [vmem:[%s389] sm:$0xf]
        %v391 = vld [vmem:[%s389 + $0x4] sm:$0xf]
        %v392 = vld [vmem:[%s389 + $0x8] sm:$0xf]
        %v393 = vld [vmem:[%s389 + $0xc] sm:$0xf]
        %v394 = vld [vmem:[%s389 + $0x10] sm:$0xf]
        %v395 = vld [vmem:[%s389 + $0x14] sm:$0xf]
        %v396 = vld [vmem:[%s389 + $0x18] sm:$0xf]
        %v397 = vld [vmem:[%s389 + $0x1c] sm:$0xf]
        %v398 = vld [vmem:[%s389 + $0x20] sm:$0xf]
        %v399 = vld [vmem:[%s389 + $0x24] sm:$0xf]
        %v400 = vld [vmem:[%s389 + $0x28] sm:$0xf]
        %v401 = vld [vmem:[%s389 + $0x2c] sm:$0xf]
        %v402 = vld [vmem:[%s389 + $0x30] sm:$0xf]
        %v403 = vld [vmem:[%s389 + $0x34] sm:$0xf]
        %v404 = vld [vmem:[%s389 + $0x38] sm:$0xf]
        %v405 = vld [vmem:[%s389 + $0x3c] sm:$0xf]
        %v422 = vunpack.c.l.b16 %v390
        %v423 = vunpack.c.l.b16 %v391
        %v424 = vunpack.c.l.b16 %v392
        %v425 = vunpack.c.l.b16 %v393
        %v426 = vunpack.c.l.b16 %v394
        %v427 = vunpack.c.l.b16 %v395
        %v428 = vunpack.c.l.b16 %v396
        %v429 = vunpack.c.l.b16 %v397
        %v430 = vunpack.c.l.b16 %v398
        %v431 = vunpack.c.l.b16 %v399
        %v432 = vunpack.c.l.b16 %v400
        %v433 = vunpack.c.l.b16 %v401
        %v434 = vunpack.c.l.b16 %v402
        %v435 = vunpack.c.l.b16 %v403
        %v436 = vunpack.c.l.b16 %v404
        %v437 = vunpack.c.l.b16 %v405
        %v438 = vpack.c.b16 %v423, %v422
        %v439 = vpack.c.b16 %v425, %v424
        %v440 = vpack.c.b16 %v427, %v426
        %v441 = vpack.c.b16 %v429, %v428
        %v442 = vpack.c.b16 %v431, %v430
        %v443 = vpack.c.b16 %v433, %v432
        %v444 = vpack.c.b16 %v435, %v434
        %v445 = vpack.c.b16 %v437, %v436
        %454 = vmatpush.bf16.msra.mxu0 %v445
        %455 = vmatpush.bf16.msra.mxu0 %v444
        %456 = vmatpush.bf16.msra.mxu0 %v443
        %457 = vmatpush.bf16.msra.mxu0 %v442
        %458 = vmatpush.bf16.msra.mxu0 %v441
        %459 = vmatpush.bf16.msra.mxu0 %v440
        %460 = vmatpush.bf16.msra.mxu0 %v439
        %461 = vmatpush.bf16.msra.mxu0 %v438
        %462 = vmatmul.bf16.gmra.mxu0 %v388
        %v463 = vpop.f32.mrf.mxu0
        %v464 = vadd.f32 0.0, %v463
        %v465 = vpop.f32.mrf.mxu0
        %466 = vdwg.mxu0
        %v467 = vadd.f32 %v384, %v464
        %v468 = vld [vmem:[#allocation2 + $0x3] sm:$0xff]
        %v469 = vpack.c.bf16 %v468, %v468
        %s470 = scalar_lea.vmem [#allocation7], 192
        %v471 = vld [vmem:[%s470] sm:$0xf]
        %v472 = vld [vmem:[%s470 + $0x4] sm:$0xf]
        %v473 = vld [vmem:[%s470 + $0x8] sm:$0xf]
        %v474 = vld [vmem:[%s470 + $0xc] sm:$0xf]
        %v475 = vld [vmem:[%s470 + $0x10] sm:$0xf]
        %v476 = vld [vmem:[%s470 + $0x14] sm:$0xf]
        %v477 = vld [vmem:[%s470 + $0x18] sm:$0xf]
        %v478 = vld [vmem:[%s470 + $0x1c] sm:$0xf]
        %v479 = vld [vmem:[%s470 + $0x20] sm:$0xf]
        %v480 = vld [vmem:[%s470 + $0x24] sm:$0xf]
        %v481 = vld [vmem:[%s470 + $0x28] sm:$0xf]
        %v482 = vld [vmem:[%s470 + $0x2c] sm:$0xf]
        %v483 = vld [vmem:[%s470 + $0x30] sm:$0xf]
        %v484 = vld [vmem:[%s470 + $0x34] sm:$0xf]
        %v485 = vld [vmem:[%s470 + $0x38] sm:$0xf]
        %v486 = vld [vmem:[%s470 + $0x3c] sm:$0xf]
        %v503 = vunpack.c.l.b16 %v471
        %v504 = vunpack.c.l.b16 %v472
        %v505 = vunpack.c.l.b16 %v473
        %v506 = vunpack.c.l.b16 %v474
        %v507 = vunpack.c.l.b16 %v475
        %v508 = vunpack.c.l.b16 %v476
        %v509 = vunpack.c.l.b16 %v477
        %v510 = vunpack.c.l.b16 %v478
        %v511 = vunpack.c.l.b16 %v479
        %v512 = vunpack.c.l.b16 %v480
        %v513 = vunpack.c.l.b16 %v481
        %v514 = vunpack.c.l.b16 %v482
        %v515 = vunpack.c.l.b16 %v483
        %v516 = vunpack.c.l.b16 %v484
        %v517 = vunpack.c.l.b16 %v485
        %v518 = vunpack.c.l.b16 %v486
        %v519 = vpack.c.b16 %v504, %v503
        %v520 = vpack.c.b16 %v506, %v505
        %v521 = vpack.c.b16 %v508, %v507
        %v522 = vpack.c.b16 %v510, %v509
        %v523 = vpack.c.b16 %v512, %v511
        %v524 = vpack.c.b16 %v514, %v513
        %v525 = vpack.c.b16 %v516, %v515
        %v526 = vpack.c.b16 %v518, %v517
        %535 = vmatpush.bf16.msra.mxu0 %v526
        %536 = vmatpush.bf16.msra.mxu0 %v525
        %537 = vmatpush.bf16.msra.mxu0 %v524
        %538 = vmatpush.bf16.msra.mxu0 %v523
        %539 = vmatpush.bf16.msra.mxu0 %v522
        %540 = vmatpush.bf16.msra.mxu0 %v521
        %541 = vmatpush.bf16.msra.mxu0 %v520
        %542 = vmatpush.bf16.msra.mxu0 %v519
        %543 = vmatmul.bf16.gmra.mxu0 %v469
        %v544 = vpop.f32.mrf.mxu0
        %v545 = vadd.f32 0.0, %v544
        %v546 = vpop.f32.mrf.mxu0
        %547 = vdwg.mxu0
        %v548 = vadd.f32 %v467, %v545
        %v549 = vld [vmem:[#allocation2 + $0x4] sm:$0xff]
        %v550 = vpack.c.bf16 %v549, %v549
        %s551 = scalar_lea.vmem [#allocation7], 256
        %v552 = vld [vmem:[%s551] sm:$0xf]
        %v553 = vld [vmem:[%s551 + $0x4] sm:$0xf]
        %v554 = vld [vmem:[%s551 + $0x8] sm:$0xf]
        %v555 = vld [vmem:[%s551 + $0xc] sm:$0xf]
        %v556 = vld [vmem:[%s551 + $0x10] sm:$0xf]
        %v557 = vld [vmem:[%s551 + $0x14] sm:$0xf]
        %v558 = vld [vmem:[%s551 + $0x18] sm:$0xf]
        %v559 = vld [vmem:[%s551 + $0x1c] sm:$0xf]
        %v560 = vld [vmem:[%s551 + $0x20] sm:$0xf]
        %v561 = vld [vmem:[%s551 + $0x24] sm:$0xf]
        %v562 = vld [vmem:[%s551 + $0x28] sm:$0xf]
        %v563 = vld [vmem:[%s551 + $0x2c] sm:$0xf]
        %v564 = vld [vmem:[%s551 + $0x30] sm:$0xf]
        %v565 = vld [vmem:[%s551 + $0x34] sm:$0xf]
        %v566 = vld [vmem:[%s551 + $0x38] sm:$0xf]
        %v567 = vld [vmem:[%s551 + $0x3c] sm:$0xf]
        %v584 = vunpack.c.l.b16 %v552
        %v585 = vunpack.c.l.b16 %v553
        %v586 = vunpack.c.l.b16 %v554
        %v587 = vunpack.c.l.b16 %v555
        %v588 = vunpack.c.l.b16 %v556
        %v589 = vunpack.c.l.b16 %v557
        %v590 = vunpack.c.l.b16 %v558
        %v591 = vunpack.c.l.b16 %v559
        %v592 = vunpack.c.l.b16 %v560
        %v593 = vunpack.c.l.b16 %v561
        %v594 = vunpack.c.l.b16 %v562
        %v595 = vunpack.c.l.b16 %v563
        %v596 = vunpack.c.l.b16 %v564
        %v597 = vunpack.c.l.b16 %v565
        %v598 = vunpack.c.l.b16 %v566
        %v599 = vunpack.c.l.b16 %v567
        %v600 = vpack.c.b16 %v585, %v584
        %v601 = vpack.c.b16 %v587, %v586
        %v602 = vpack.c.b16 %v589, %v588
        %v603 = vpack.c.b16 %v591, %v590
        %v604 = vpack.c.b16 %v593, %v592
        %v605 = vpack.c.b16 %v595, %v594
        %v606 = vpack.c.b16 %v597, %v596
        %v607 = vpack.c.b16 %v599, %v598
        %616 = vmatpush.bf16.msra.mxu0 %v607
        %617 = vmatpush.bf16.msra.mxu0 %v606
        %618 = vmatpush.bf16.msra.mxu0 %v605
        %619 = vmatpush.bf16.msra.mxu0 %v604
        %620 = vmatpush.bf16.msra.mxu0 %v603
        %621 = vmatpush.bf16.msra.mxu0 %v602
        %622 = vmatpush.bf16.msra.mxu0 %v601
        %623 = vmatpush.bf16.msra.mxu0 %v600
        %624 = vmatmul.bf16.gmra.mxu0 %v550
        %v625 = vpop.f32.mrf.mxu0
        %v626 = vadd.f32 0.0, %v625
        %v627 = vpop.f32.mrf.mxu0
        %628 = vdwg.mxu0
        %v629 = vadd.f32 %v548, %v626
        %v630 = vld [vmem:[#allocation9] sm:$0x1]
        %v632 = vperm.slane %v630, 0
        %v634 = vadd.f32 %v629, %v632
        %v635 = vmax.f32 %v634, 0.0
        %636 = vst [vmem:[#allocation3 + $0x2] sm:$0xff] %v635
        %v637 = vld [vmem:[#allocation3] sm:$0xff]
        %v638 = vpack.c.bf16 %v637, %v637
        %s639 = scalar_lea.vmem [#allocation7], 320
        %v640 = vld [vmem:[%s639] sm:$0xf]
        %v641 = vld [vmem:[%s639 + $0x4] sm:$0xf]
        %v642 = vld [vmem:[%s639 + $0x8] sm:$0xf]
        %v643 = vld [vmem:[%s639 + $0xc] sm:$0xf]
        %v644 = vld [vmem:[%s639 + $0x10] sm:$0xf]
        %v645 = vld [vmem:[%s639 + $0x14] sm:$0xf]
        %v646 = vld [vmem:[%s639 + $0x18] sm:$0xf]
        %v647 = vld [vmem:[%s639 + $0x1c] sm:$0xf]
        %v648 = vld [vmem:[%s639 + $0x20] sm:$0xf]
        %v649 = vld [vmem:[%s639 + $0x24] sm:$0xf]
        %v650 = vld [vmem:[%s639 + $0x28] sm:$0xf]
        %v651 = vld [vmem:[%s639 + $0x2c] sm:$0xf]
        %v652 = vld [vmem:[%s639 + $0x30] sm:$0xf]
        %v653 = vld [vmem:[%s639 + $0x34] sm:$0xf]
        %v654 = vld [vmem:[%s639 + $0x38] sm:$0xf]
        %v655 = vld [vmem:[%s639 + $0x3c] sm:$0xf]
        %v656 = vld [vmem:[#allocation3 + $0x1] sm:$0xff]
        %v657 = vpack.c.bf16 %v656, %v656
        %s658 = scalar_lea.vmem [#allocation7], 384
        %v659 = vld [vmem:[%s658] sm:$0xf]
        %v660 = vld [vmem:[%s658 + $0x4] sm:$0xf]
        %v661 = vld [vmem:[%s658 + $0x8] sm:$0xf]
        %v662 = vld [vmem:[%s658 + $0xc] sm:$0xf]
        %v663 = vld [vmem:[%s658 + $0x10] sm:$0xf]
        %v664 = vld [vmem:[%s658 + $0x14] sm:$0xf]
        %v665 = vld [vmem:[%s658 + $0x18] sm:$0xf]
        %v666 = vld [vmem:[%s658 + $0x1c] sm:$0xf]
        %v667 = vld [vmem:[%s658 + $0x20] sm:$0xf]
        %v668 = vld [vmem:[%s658 + $0x24] sm:$0xf]
        %v669 = vld [vmem:[%s658 + $0x28] sm:$0xf]
        %v670 = vld [vmem:[%s658 + $0x2c] sm:$0xf]
        %v671 = vld [vmem:[%s658 + $0x30] sm:$0xf]
        %v672 = vld [vmem:[%s658 + $0x34] sm:$0xf]
        %v673 = vld [vmem:[%s658 + $0x38] sm:$0xf]
        %v674 = vld [vmem:[%s658 + $0x3c] sm:$0xf]
        %v691 = vunpack.c.l.b16 %v659
        %v692 = vunpack.c.l.b16 %v660
        %v693 = vunpack.c.l.b16 %v661
        %v694 = vunpack.c.l.b16 %v662
        %v695 = vunpack.c.l.b16 %v663
        %v696 = vunpack.c.l.b16 %v664
        %v697 = vunpack.c.l.b16 %v665
        %v698 = vunpack.c.l.b16 %v666
        %v699 = vunpack.c.l.b16 %v667
        %v700 = vunpack.c.l.b16 %v668
        %v701 = vunpack.c.l.b16 %v669
        %v702 = vunpack.c.l.b16 %v670
        %v703 = vunpack.c.l.b16 %v671
        %v704 = vunpack.c.l.b16 %v672
        %v705 = vunpack.c.l.b16 %v673
        %v706 = vunpack.c.l.b16 %v674
        %v707 = vpack.c.b16 %v692, %v691
        %v708 = vpack.c.b16 %v694, %v693
        %v709 = vpack.c.b16 %v696, %v695
        %v710 = vpack.c.b16 %v698, %v697
        %v711 = vpack.c.b16 %v700, %v699
        %v712 = vpack.c.b16 %v702, %v701
        %v713 = vpack.c.b16 %v704, %v703
        %v714 = vpack.c.b16 %v706, %v705
        %723 = vmatpush.bf16.msra.mxu0 %v714
        %724 = vmatpush.bf16.msra.mxu0 %v713
        %725 = vmatpush.bf16.msra.mxu0 %v712
        %726 = vmatpush.bf16.msra.mxu0 %v711
        %727 = vmatpush.bf16.msra.mxu0 %v710
        %728 = vmatpush.bf16.msra.mxu0 %v709
        %729 = vmatpush.bf16.msra.mxu0 %v708
        %730 = vmatpush.bf16.msra.mxu0 %v707
        %731 = vmatmul.bf16.gmra.mxu0 %v657
        %v732 = vpop.f32.mrf.mxu0
        %v733 = vadd.f32 0.0, %v732
        %v734 = vpop.f32.mrf.mxu0
        %735 = vdwg.mxu0
        %v752 = vunpack.c.l.b16 %v640
        %v753 = vunpack.c.l.b16 %v641
        %v754 = vunpack.c.l.b16 %v642
        %v755 = vunpack.c.l.b16 %v643
        %v756 = vunpack.c.l.b16 %v644
        %v757 = vunpack.c.l.b16 %v645
        %v758 = vunpack.c.l.b16 %v646
        %v759 = vunpack.c.l.b16 %v647
        %v760 = vunpack.c.l.b16 %v648
        %v761 = vunpack.c.l.b16 %v649
        %v762 = vunpack.c.l.b16 %v650
        %v763 = vunpack.c.l.b16 %v651
        %v764 = vunpack.c.l.b16 %v652
        %v765 = vunpack.c.l.b16 %v653
        %v766 = vunpack.c.l.b16 %v654
        %v767 = vunpack.c.l.b16 %v655
        %v768 = vpack.c.b16 %v753, %v752
        %v769 = vpack.c.b16 %v755, %v754
        %v770 = vpack.c.b16 %v757, %v756
        %v771 = vpack.c.b16 %v759, %v758
        %v772 = vpack.c.b16 %v761, %v760
        %v773 = vpack.c.b16 %v763, %v762
        %v774 = vpack.c.b16 %v765, %v764
        %v775 = vpack.c.b16 %v767, %v766
        %784 = vmatpush.bf16.msra.mxu0 %v775
        %785 = vmatpush.bf16.msra.mxu0 %v774
        %786 = vmatpush.bf16.msra.mxu0 %v773
        %787 = vmatpush.bf16.msra.mxu0 %v772
        %788 = vmatpush.bf16.msra.mxu0 %v771
        %789 = vmatpush.bf16.msra.mxu0 %v770
        %790 = vmatpush.bf16.msra.mxu0 %v769
        %791 = vmatpush.bf16.msra.mxu0 %v768
        %792 = vmatmul.bf16.gmra.mxu0 %v638
        %v793 = vpop.f32.mrf.mxu0
        %v794 = vadd.f32 %v733, %v793
        %v795 = vpop.f32.mrf.mxu0
        %796 = vdwg.mxu0
        %v797 = vld [vmem:[#allocation3 + $0x2] sm:$0xff]
        %v798 = vpack.c.bf16 %v797, %v797
        %s799 = scalar_lea.vmem [#allocation7], 448
        %v800 = vld [vmem:[%s799] sm:$0xf]
        %v801 = vld [vmem:[%s799 + $0x4] sm:$0xf]
        %v802 = vld [vmem:[%s799 + $0x8] sm:$0xf]
        %v803 = vld [vmem:[%s799 + $0xc] sm:$0xf]
        %v804 = vld [vmem:[%s799 + $0x10] sm:$0xf]
        %v805 = vld [vmem:[%s799 + $0x14] sm:$0xf]
        %v806 = vld [vmem:[%s799 + $0x18] sm:$0xf]
        %v807 = vld [vmem:[%s799 + $0x1c] sm:$0xf]
        %v808 = vld [vmem:[%s799 + $0x20] sm:$0xf]
        %v809 = vld [vmem:[%s799 + $0x24] sm:$0xf]
        %v810 = vld [vmem:[%s799 + $0x28] sm:$0xf]
        %v811 = vld [vmem:[%s799 + $0x2c] sm:$0xf]
        %v812 = vld [vmem:[%s799 + $0x30] sm:$0xf]
        %v813 = vld [vmem:[%s799 + $0x34] sm:$0xf]
        %v814 = vld [vmem:[%s799 + $0x38] sm:$0xf]
        %v815 = vld [vmem:[%s799 + $0x3c] sm:$0xf]
        %v832 = vunpack.c.l.b16 %v800
        %v833 = vunpack.c.l.b16 %v801
        %v834 = vunpack.c.l.b16 %v802
        %v835 = vunpack.c.l.b16 %v803
        %v836 = vunpack.c.l.b16 %v804
        %v837 = vunpack.c.l.b16 %v805
        %v838 = vunpack.c.l.b16 %v806
        %v839 = vunpack.c.l.b16 %v807
        %v840 = vunpack.c.l.b16 %v808
        %v841 = vunpack.c.l.b16 %v809
        %v842 = vunpack.c.l.b16 %v810
        %v843 = vunpack.c.l.b16 %v811
        %v844 = vunpack.c.l.b16 %v812
        %v845 = vunpack.c.l.b16 %v813
        %v846 = vunpack.c.l.b16 %v814
        %v847 = vunpack.c.l.b16 %v815
        %v848 = vpack.c.b16 %v833, %v832
        %v849 = vpack.c.b16 %v835, %v834
        %v850 = vpack.c.b16 %v837, %v836
        %v851 = vpack.c.b16 %v839, %v838
        %v852 = vpack.c.b16 %v841, %v840
        %v853 = vpack.c.b16 %v843, %v842
        %v854 = vpack.c.b16 %v845, %v844
        %v855 = vpack.c.b16 %v847, %v846
        %864 = vmatpush.bf16.msra.mxu0 %v855
        %865 = vmatpush.bf16.msra.mxu0 %v854
        %866 = vmatpush.bf16.msra.mxu0 %v853
        %867 = vmatpush.bf16.msra.mxu0 %v852
        %868 = vmatpush.bf16.msra.mxu0 %v851
        %869 = vmatpush.bf16.msra.mxu0 %v850
        %870 = vmatpush.bf16.msra.mxu0 %v849
        %871 = vmatpush.bf16.msra.mxu0 %v848
        %872 = vmatmul.bf16.gmra.mxu0 %v798
        %v873 = vpop.f32.mrf.mxu0
        %v874 = vadd.f32 0.0, %v873
        %v875 = vpop.f32.mrf.mxu0
        %876 = vdwg.mxu0
        %v877 = vadd.f32 %v794, %v874
        %v878 = vld [vmem:[#allocation3 + $0x3] sm:$0xff]
        %v879 = vpack.c.bf16 %v878, %v878
        %s880 = scalar_lea.vmem [#allocation7], 512
        %v881 = vld [vmem:[%s880] sm:$0xf]
        %v882 = vld [vmem:[%s880 + $0x4] sm:$0xf]
        %v883 = vld [vmem:[%s880 + $0x8] sm:$0xf]
        %v884 = vld [vmem:[%s880 + $0xc] sm:$0xf]
        %v885 = vld [vmem:[%s880 + $0x10] sm:$0xf]
        %v886 = vld [vmem:[%s880 + $0x14] sm:$0xf]
        %v887 = vld [vmem:[%s880 + $0x18] sm:$0xf]
        %v888 = vld [vmem:[%s880 + $0x1c] sm:$0xf]
        %v889 = vld [vmem:[%s880 + $0x20] sm:$0xf]
        %v890 = vld [vmem:[%s880 + $0x24] sm:$0xf]
        %v891 = vld [vmem:[%s880 + $0x28] sm:$0xf]
        %v892 = vld [vmem:[%s880 + $0x2c] sm:$0xf]
        %v893 = vld [vmem:[%s880 + $0x30] sm:$0xf]
        %v894 = vld [vmem:[%s880 + $0x34] sm:$0xf]
        %v895 = vld [vmem:[%s880 + $0x38] sm:$0xf]
        %v896 = vld [vmem:[%s880 + $0x3c] sm:$0xf]
        %v913 = vunpack.c.l.b16 %v881
        %v914 = vunpack.c.l.b16 %v882
        %v915 = vunpack.c.l.b16 %v883
        %v916 = vunpack.c.l.b16 %v884
        %v917 = vunpack.c.l.b16 %v885
        %v918 = vunpack.c.l.b16 %v886
        %v919 = vunpack.c.l.b16 %v887
        %v920 = vunpack.c.l.b16 %v888
        %v921 = vunpack.c.l.b16 %v889
        %v922 = vunpack.c.l.b16 %v890
        %v923 = vunpack.c.l.b16 %v891
        %v924 = vunpack.c.l.b16 %v892
        %v925 = vunpack.c.l.b16 %v893
        %v926 = vunpack.c.l.b16 %v894
        %v927 = vunpack.c.l.b16 %v895
        %v928 = vunpack.c.l.b16 %v896
        %v929 = vpack.c.b16 %v914, %v913
        %v930 = vpack.c.b16 %v916, %v915
        %v931 = vpack.c.b16 %v918, %v917
        %v932 = vpack.c.b16 %v920, %v919
        %v933 = vpack.c.b16 %v922, %v921
        %v934 = vpack.c.b16 %v924, %v923
        %v935 = vpack.c.b16 %v926, %v925
        %v936 = vpack.c.b16 %v928, %v927
        %945 = vmatpush.bf16.msra.mxu0 %v936
        %946 = vmatpush.bf16.msra.mxu0 %v935
        %947 = vmatpush.bf16.msra.mxu0 %v934
        %948 = vmatpush.bf16.msra.mxu0 %v933
        %949 = vmatpush.bf16.msra.mxu0 %v932
        %950 = vmatpush.bf16.msra.mxu0 %v931
        %951 = vmatpush.bf16.msra.mxu0 %v930
        %952 = vmatpush.bf16.msra.mxu0 %v929
        %953 = vmatmul.bf16.gmra.mxu0 %v879
        %v954 = vpop.f32.mrf.mxu0
        %v955 = vadd.f32 0.0, %v954
        %v956 = vpop.f32.mrf.mxu0
        %957 = vdwg.mxu0
        %v958 = vadd.f32 %v877, %v955
        %v959 = vld [vmem:[#allocation3 + $0x4] sm:$0xff]
        %v960 = vpack.c.bf16 %v959, %v959
        %s961 = scalar_lea.vmem [#allocation7], 576
        %v962 = vld [vmem:[%s961] sm:$0xf]
        %v963 = vld [vmem:[%s961 + $0x4] sm:$0xf]
        %v964 = vld [vmem:[%s961 + $0x8] sm:$0xf]
        %v965 = vld [vmem:[%s961 + $0xc] sm:$0xf]
        %v966 = vld [vmem:[%s961 + $0x10] sm:$0xf]
        %v967 = vld [vmem:[%s961 + $0x14] sm:$0xf]
        %v968 = vld [vmem:[%s961 + $0x18] sm:$0xf]
        %v969 = vld [vmem:[%s961 + $0x1c] sm:$0xf]
        %v970 = vld [vmem:[%s961 + $0x20] sm:$0xf]
        %v971 = vld [vmem:[%s961 + $0x24] sm:$0xf]
        %v972 = vld [vmem:[%s961 + $0x28] sm:$0xf]
        %v973 = vld [vmem:[%s961 + $0x2c] sm:$0xf]
        %v974 = vld [vmem:[%s961 + $0x30] sm:$0xf]
        %v975 = vld [vmem:[%s961 + $0x34] sm:$0xf]
        %v976 = vld [vmem:[%s961 + $0x38] sm:$0xf]
        %v977 = vld [vmem:[%s961 + $0x3c] sm:$0xf]
        %v994 = vunpack.c.l.b16 %v962
        %v995 = vunpack.c.l.b16 %v963
        %v996 = vunpack.c.l.b16 %v964
        %v997 = vunpack.c.l.b16 %v965
        %v998 = vunpack.c.l.b16 %v966
        %v999 = vunpack.c.l.b16 %v967
        %v1000 = vunpack.c.l.b16 %v968
        %v1001 = vunpack.c.l.b16 %v969
        %v1002 = vunpack.c.l.b16 %v970
        %v1003 = vunpack.c.l.b16 %v971
        %v1004 = vunpack.c.l.b16 %v972
        %v1005 = vunpack.c.l.b16 %v973
        %v1006 = vunpack.c.l.b16 %v974
        %v1007 = vunpack.c.l.b16 %v975
        %v1008 = vunpack.c.l.b16 %v976
        %v1009 = vunpack.c.l.b16 %v977
        %v1010 = vpack.c.b16 %v995, %v994
        %v1011 = vpack.c.b16 %v997, %v996
        %v1012 = vpack.c.b16 %v999, %v998
        %v1013 = vpack.c.b16 %v1001, %v1000
        %v1014 = vpack.c.b16 %v1003, %v1002
        %v1015 = vpack.c.b16 %v1005, %v1004
        %v1016 = vpack.c.b16 %v1007, %v1006
        %v1017 = vpack.c.b16 %v1009, %v1008
        %1026 = vmatpush.bf16.msra.mxu0 %v1017
        %1027 = vmatpush.bf16.msra.mxu0 %v1016
        %1028 = vmatpush.bf16.msra.mxu0 %v1015
        %1029 = vmatpush.bf16.msra.mxu0 %v1014
        %1030 = vmatpush.bf16.msra.mxu0 %v1013
        %1031 = vmatpush.bf16.msra.mxu0 %v1012
        %1032 = vmatpush.bf16.msra.mxu0 %v1011
        %1033 = vmatpush.bf16.msra.mxu0 %v1010
        %1034 = vmatmul.bf16.gmra.mxu0 %v960
        %v1035 = vpop.f32.mrf.mxu0
        %v1036 = vadd.f32 0.0, %v1035
        %v1037 = vpop.f32.mrf.mxu0
        %1038 = vdwg.mxu0
        %v1039 = vadd.f32 %v958, %v1036
        %s1040 = scalar_lea.vmem [#allocation9], 1
        %v1041 = vld [vmem:[%s1040] sm:$0x1]
        %v1043 = vperm.slane %v1041, 0
        %v1045 = vadd.f32 %v1039, %v1043
        %v1046 = vmax.f32 %v1045, 0.0
        %1047 = vst [vmem:[%s220] sm:$0xff] %v1046
        %s1048 = sand.u32 %s97, 1
        %s1049 = scalar_lea.sflag [#allocation6], %s1048
        %s1050 = sand.u32 %s97, 1
        %s1051 = smul.addr %s1050, 8
        %s1052 = scalar_lea.vmem [#allocation10], %s1051
        // Predicated region
        $region45: #{tpu_custom_call.1} parent=31 // pred_check
          %p1053 = pneg %p107
        $region46: #{tpu_custom_call.1} parent=31 // pred_check_branch
          %1055 = sbr.rel (%p1053) target = $region48
        $region47: #{tpu_custom_call.1} parent=31 // pred_region
          %1057 = vsyncadd %s1049, 0
          %s1058 = smul.addr %s21, 8
          %s1059 = scalar_lea.hbm %s3, %s1058
          %s1061 = sshll.u32 %s1052, 4
          %s1062 = int_to_ptr.vmem [resolvable:$true] %s1061
          %s1063 = sshll.u32 %s1059, 4
          %s1064 = int_to_ptr.hbm [resolvable:$true] %s1063
          %1066 = dma.vmem_to_hbm [thread:$0]  %s1062, 128, %s1064, %s1049
        $region48: #{tpu_custom_call.1} parent=31 // pred_fallthru
          _
      $region32: #{tpu_custom_call.1} parent=5 // pred_fallthru
        _
      %p1067 = scmp.le.s32.totalorder 2, %s16
      // Predicated region
      $region49: #{tpu_custom_call.1} parent=5 // pred_check
        %p1068 = pneg %p1067
      $region50: #{tpu_custom_call.1} parent=5 // pred_check_branch
        %1070 = sbr.rel (%p1068) target = $region52
      $region51: #{tpu_custom_call.1} parent=5 // pred_region
        %s1071 = ssub.s32 %s16, 2
        // Predicated region
        $region53: #{tpu_custom_call.1} parent=51 // pred_check
          %p1072 = pneg %p113
        $region54: #{tpu_custom_call.1} parent=51 // pred_check_branch
          %1074 = sbr.rel (%p1072) target = $region56
        $region55: #{tpu_custom_call.1} parent=51 // pred_region
          %s1075 = sand.u32 %s98, 1
          %s1076 = scalar_lea.sflag [#allocation6], %s1075
          %s1077 = sand.u32 %s98, 1
          %s1078 = smul.addr %s1077, 8
          %s1079 = scalar_lea.vmem [#allocation10], %s1078
          %1081 = dma.done %s1076, 128
        $region56: #{tpu_custom_call.1} parent=51 // pred_fallthru
          _
      $region52: #{tpu_custom_call.1} parent=5 // pred_fallthru
        _
    $region6: #{tpu_custom_call.1} parent=1 // loop_footer
      %s20 = sadd.s32 1, %s16
    $region7: #{tpu_custom_call.1} parent=1 // loop_footer_branch
      %15 = sbr.rel target = $region3
    $region8: #{tpu_custom_call.1} parent=1 // loop_exit
      _
    %1082 = vsyncpa [#allocation5], 1
    %s1083 = scalar_lea.sflag [#allocation5], 1
    %1084 = vsyncpa %s1083, 1
    %1085 = vsyncpa [#allocation8], 1
    %1086 = vsyncpa [#allocation6], 1
    %s1087 = scalar_lea.sflag [#allocation6], 1
    %1088 = vsyncpa %s1087, 1

</llo_original>
